<compile_context>
chip_gen: v6e
topology: v6e:2x2x1
jax: 0.10.0
libtpu: 0.0.40
codegen_flags: <defaults>
</compile_context>

<pallas_src>
import functools
import math

import jax
import jax.numpy as jnp
from jax.experimental import pallas as pl
from jax.experimental.pallas import tpu as pltpu

_EPS = 1e-5


def _make_kernel(layers, use_bn, b_blk, w_dtype, eps=_EPS):
    """Fused forward kernel for a fixed (layers, use_bn, b_blk, w_dtype) config.

    Kernel args (PrefetchScalarGridSpec, num_scalar_prefetch=1):
        t_ref   : SMEM (B,)             per-evaluation time scalar
        x_ref   : VMEM (b_blk, N, d)    b_blk evaluations' batches
        vec_ref : VMEM (P, d)           stacked [gamma, beta, bias]*layers (or [bias]*layers)
        w_ref   : VMEM (layers, d, d)   stacked transposed Linear weights (w_dtype)
        o_ref   : VMEM (b_blk, N, d)
    """

    def kernel(t_ref, x_ref, vec_ref, w_ref, o_ref):
        base = pl.program_id(0) * b_blk
        n = x_ref.shape[1]
        d = x_ref.shape[2]

        # x = x + time_fun(t, x) with time_fun = sin(t)*x  ->  x * (1 + sin(t)).
        # t differs per evaluation; b_blk is small & static, so unroll.
        # TODO(synk): the original module takes an arbitrary `time_fun` callable;
        # a deterministic stand-in sin(t)*x is used here.
        slabs = [
            x_ref[i].astype(jnp.float32) * (1.0 + jnp.sin(t_ref[base + i]))
            for i in range(b_blk)
        ]
        x = jnp.stack(slabs, axis=0)                          # (b_blk, N, d)

        # NOTE: layers is small here -> static unroll (per review, keep the
        # unroll for layers<=~4).  For deeper stacks switch to lax.fori_loop
        # with dynamic w_ref[li] / pl.ds vec slices to bound vreg live ranges.
        for li in range(layers):
            if use_bn:
                g = vec_ref[3 * li: 3 * li + 1, :]             # (1, d)
                beta = vec_ref[3 * li + 1: 3 * li + 2, :]      # (1, d)
                bias = vec_ref[3 * li + 2: 3 * li + 3, :]      # (1, d)
                # Per-evaluation batch stats (axis=1), biased variance via
                # E[x^2]-E[x]^2: two independent XLU reductions that overlap.
                mu = jnp.mean(x, axis=1, keepdims=True)        # (b_blk, 1, d)
                ex2 = jnp.mean(x * x, axis=1, keepdims=True)
                var = jnp.maximum(ex2 - mu * mu, 0.0)
                x = (x - mu) * jax.lax.rsqrt(var + eps) * g + beta
            else:
                bias = vec_ref[li: li + 1, :]                  # (1, d)

            # Batched matmul: flatten evaluations into the M dim so the MXU
            # sees M = b_blk*N (much better occupancy than per-eval (N,d) dots).
            lhs = x.reshape(b_blk * n, d).astype(w_dtype)
            y = jnp.dot(lhs, w_ref[li], preferred_element_type=jnp.float32)
            x = y.reshape(b_blk, n, d) + bias

            if li < layers - 1:
                # Mish(x) = x*tanh(softplus(x)) == x * (1 - 2/((1+e^x)^2 + 1));
                # exp + approx reciprocal both run on the EUP (VALU stays free).
                e = jnp.exp(x)
                x = x * (1.0 - 2.0 * pl.reciprocal(
                    (1.0 + e) * (1.0 + e) + 1.0, approx=True))

        o_ref[...] = x.astype(o_ref.dtype)

    return kernel


def _default_num_blocks(batch):
    """One fat block per TensorCore: 2 on v7x (2 TCs/chip), else 1."""
    try:
        kind = jax.devices()[0].device_kind.lower()
    except Exception:
        kind = ""
    if batch >= 2 and batch % 2 == 0 and ("v7" in kind or "tpu7" in kind):
        return 2
    return 1


def func_time_forward(t, x, vec_params, w_params, *, layers, use_bn,
                      num_blocks=None):
    """Run B independent forward evaluations under one pallas_call.

    Args:
      t          : (B,) float32        time value per evaluation
      x          : (B, N, d) float32   B independent batches (BN stats over N rows each)
      vec_params : (P, d) float32      stacked per-layer vectors
      w_params   : (layers, d, d)      stacked transposed weights (f32 or bf16)
      num_blocks : grid size; each grid step owns B//num_blocks evaluations.
                   Default: 2 on v7x (one fat block per TensorCore), else 1.
    Returns:
      (B, N, d) float32
    """
    B, N, d = x.shape
    if num_blocks is None:
        num_blocks = _default_num_blocks(B)
    if num_blocks < 1 or B % num_blocks != 0:
        num_blocks = 1
    b_blk = B // num_blocks

    kernel = _make_kernel(layers, use_bn, b_blk, w_params.dtype)
    t_arr = jnp.asarray(t, jnp.float32).reshape(B)

    # Constant index_map params are never re-fetched -> single-buffer them.
    param_buffering = pl.Buffered(1)

    grid_spec = pltpu.PrefetchScalarGridSpec(
        num_scalar_prefetch=1,                                 # t -> SMEM
        grid=(num_blocks,),
        in_specs=[
            pl.BlockSpec((b_blk, N, d), lambda g, t_smem: (g, 0, 0)),
            pl.BlockSpec(vec_params.shape, lambda g, t_smem: (0, 0),
                         pipeline_mode=param_buffering),
            pl.BlockSpec(w_params.shape, lambda g, t_smem: (0, 0, 0),
                         pipeline_mode=param_buffering),
        ],
        out_specs=pl.BlockSpec((b_blk, N, d), lambda g, t_smem: (g, 0, 0)),
    )

    # VMEM budget guard (matters on v7x: 64 MiB physical / 32 MiB default scoped).
    block_bytes = b_blk * N * d * 4
    resident = (vec_params.size * vec_params.dtype.itemsize
                + w_params.size * w_params.dtype.itemsize)
    vmem_est = 2 * 2 * block_bytes + resident + 4 * block_bytes
    vmem_limit = None
    if vmem_est > 32 * 1024 * 1024:
        # TODO(synk): if `resident` alone approaches v7x's 64 MiB physical VMEM,
        # stream the weights over an extra "arbitrary" layers grid axis instead.
        vmem_limit = min(int(vmem_est * 1.25), 60 * 1024 * 1024)

    return pl.pallas_call(
        kernel,
        out_shape=jax.ShapeDtypeStruct((B, N, d), jnp.float32),
        grid_spec=grid_spec,
        compiler_params=pltpu.CompilerParams(
            dimension_semantics=("parallel",),   # one fat block per TC on v7x
            vmem_limit_bytes=vmem_limit,
        ),
    )(t_arr, x, vec_params, w_params)


def init_params(key, d, layers, use_bn, param_dtype=jnp.bfloat16):
    """Stacked parameters matching the module's shapes.

    vec_params rows per layer: [gamma, beta, bias] if BN else [bias] (float32).
    w_params[l] = W_l^T stored in `param_dtype` (bf16 default -> fast MXU path),
    so the kernel computes x @ W^T + b like nn.Linear.
    Linear init follows PyTorch's default U(-1/sqrt(d), 1/sqrt(d)).
    """
    bound = 1.0 / math.sqrt(d)
    vec_rows, w_list = [], []
    for _ in range(layers):
        if use_bn:
            vec_rows.append(jnp.ones((d,), jnp.float32))       # BN weight (gamma)
            vec_rows.append(jnp.zeros((d,), jnp.float32))      # BN bias   (beta)
        key, kw, kb = jax.random.split(key, 3)
        w = jax.random.uniform(kw, (d, d), jnp.float32, -bound, bound)
        b = jax.random.uniform(kb, (d,), jnp.float32, -bound, bound)
        w_list.append(w.T.astype(param_dtype))                 # pre-transposed
        vec_rows.append(b)                                      # Linear bias
    vec_params = jnp.stack(vec_rows, axis=0)                    # (P, d) f32
    w_params = jnp.stack(w_list, axis=0)                        # (layers, d, d)
    return vec_params, w_params


def func_time_reference(t, x, vec_params, w_params, *, layers, use_bn, eps=_EPS):
    """Pure-JAX f32 reference (standard softplus/tanh Mish, two-pass variance).

    Uses the same stored weights (upcast to f32) so the comparison isolates
    kernel error from parameter quantization.
    """
    w = w_params.astype(jnp.float32)
    vec = vec_params.astype(jnp.float32)

    def one(tb, xb):
        y = xb + jnp.sin(tb) * xb
        for li in range(layers):
            if use_bn:
                g, beta, bias = vec[3 * li], vec[3 * li + 1], vec[3 * li + 2]
                mu = jnp.mean(y, axis=0, keepdims=True)
                var = jnp.mean((y - mu) ** 2, axis=0, keepdims=True)
                y = (y - mu) * jax.lax.rsqrt(var + eps) * g + beta
            else:
                bias = vec[li]
            y = y @ w[li] + bias
            if li < layers - 1:
                y = y * jnp.tanh(jnp.logaddexp(y, 0.0))
        return y

    return jax.vmap(one)(t, x)


if __name__ == "__main__":
    D = 128       # feature dim: multiple of 128 -> lane-dense (unmasked) stores
    N = 8         # rows per batch (BN statistics computed over these N rows)
    B = 4         # independent forward evaluations under one pallas_call
    LAYERS = 2
    BN = True

    key = jax.random.PRNGKey(0)
    key, kx, kt = jax.random.split(key, 3)
    x = jax.random.normal(kx, (B, N, D), jnp.float32)
    t = jax.random.uniform(kt, (B,), jnp.float32, 0.0, 1.0)

    # --- optimized path: bf16 weights on the MXU, auto grid (1 fat block / TC) ---
    vec_bf16, w_bf16 = init_params(key, D, LAYERS, BN, param_dtype=jnp.bfloat16)
    fwd = jax.jit(functools.partial(func_time_forward, layers=LAYERS, use_bn=BN))
    out = fwd(t, x, vec_bf16, w_bf16)
    jax.block_until_ready(out)
    assert out.shape == (B, N, D) and out.dtype == jnp.float32

    ref = func_time_reference(t, x, vec_bf16, w_bf16, layers=LAYERS, use_bn=BN)
    err = float(jnp.max(jnp.abs(out - ref)))
    # Tolerance covers bf16 activations at the dot, approx-rcp Mish and the
    # BN rsqrt error amplification flagged in the review.
    assert jnp.allclose(out, ref, rtol=4e-2, atol=4e-2), err

    # --- f32-weight path, explicit grid=(2,) (one block per v7x TensorCore) ---
    vec_f32, w_f32 = init_params(key, D, LAYERS, BN, param_dtype=jnp.float32)
    fwd2 = jax.jit(functools.partial(func_time_forward, layers=LAYERS, use_bn=BN,
                                     num_blocks=2))
    out2 = fwd2(t, x, vec_f32, w_f32)
    jax.block_until_ready(out2)
    assert out2.shape == (B, N, D) and out2.dtype == jnp.float32
    ref2 = func_time_reference(t, x, vec_f32, w_f32, layers=LAYERS, use_bn=BN)
    err2 = float(jnp.max(jnp.abs(out2 - ref2)))
    assert jnp.allclose(out2, ref2, rtol=1e-2, atol=1e-2), err2

    print("KERNEL_OK")
</pallas_src>

<mosaic_0001>
module attributes {stable_mosaic.version = 11 : i64} {
  func.func @kernel(%arg0: i32, %arg1: memref<4xf32, #tpu.memory_space<smem>>, %arg2: memref<4x8x128xf32, #tpu.memory_space<vmem>>, %arg3: memref<6x128xf32, #tpu.memory_space<vmem>>, %arg4: memref<2x128x128xbf16, #tpu.memory_space<vmem>>, %arg5: memref<4x8x128xf32, #tpu.memory_space<vmem>>) attributes {dimension_semantics = [#tpu.dimension_semantics<parallel>], iteration_bounds = array<i64: 1>, scalar_prefetch = 1 : i64, scratch_operands = 0 : i64, tpu.core_type = #tpu.core_type<tc>, window_params = [{transform_indices = @transform_0, window_bounds = array<i64: 4, 8, 128>}, {pipeline_mode = #tpu.pipeline_mode<synchronous>, transform_indices = @transform_1, window_bounds = array<i64: 6, 128>}, {pipeline_mode = #tpu.pipeline_mode<synchronous>, transform_indices = @transform_2, window_bounds = array<i64: 2, 128, 128>}, {transform_indices = @transform_3, window_bounds = array<i64: 4, 8, 128>}]} {
    %c4_i32 = arith.constant 4 : i32
    %0 = arith.muli %arg0, %c4_i32 : i32
    %c0 = arith.constant 0 : index
    %c0_0 = arith.constant 0 : index
    %c0_1 = arith.constant 0 : index
    %1 = vector.load %arg2[%c0, %c0_0, %c0_1] : memref<4x8x128xf32, #tpu.memory_space<vmem>>, vector<1x8x128xf32>
    %2 = vector.shape_cast %1 : vector<1x8x128xf32> to vector<8x128xf32>
    %c0_i32 = arith.constant 0 : i32
    %3 = arith.addi %0, %c0_i32 : i32
    %4 = arith.index_cast %3 : i32 to index
    %5 = memref.load %arg1[%4] : memref<4xf32, #tpu.memory_space<smem>>
    %6 = math.sin %5 : f32
    %cst = arith.constant 1.000000e+00 : f32
    %7 = arith.addf %cst, %6 : f32
    %8 = vector.broadcast %7 : f32 to vector<8x128xf32>
    %9 = arith.mulf %2, %8 : vector<8x128xf32>
    %c1 = arith.constant 1 : index
    %c0_2 = arith.constant 0 : index
    %c0_3 = arith.constant 0 : index
    %10 = vector.load %arg2[%c1, %c0_2, %c0_3] : memref<4x8x128xf32, #tpu.memory_space<vmem>>, vector<1x8x128xf32>
    %11 = vector.shape_cast %10 : vector<1x8x128xf32> to vector<8x128xf32>
    %c1_i32 = arith.constant 1 : i32
    %12 = arith.addi %0, %c1_i32 : i32
    %13 = arith.index_cast %12 : i32 to index
    %14 = memref.load %arg1[%13] : memref<4xf32, #tpu.memory_space<smem>>
    %15 = math.sin %14 : f32
    %cst_4 = arith.constant 1.000000e+00 : f32
    %16 = arith.addf %cst_4, %15 : f32
    %17 = vector.broadcast %16 : f32 to vector<8x128xf32>
    %18 = arith.mulf %11, %17 : vector<8x128xf32>
    %c2 = arith.constant 2 : index
    %c0_5 = arith.constant 0 : index
    %c0_6 = arith.constant 0 : index
    %19 = vector.load %arg2[%c2, %c0_5, %c0_6] : memref<4x8x128xf32, #tpu.memory_space<vmem>>, vector<1x8x128xf32>
    %20 = vector.shape_cast %19 : vector<1x8x128xf32> to vector<8x128xf32>
    %c2_i32 = arith.constant 2 : i32
    %21 = arith.addi %0, %c2_i32 : i32
    %22 = arith.index_cast %21 : i32 to index
    %23 = memref.load %arg1[%22] : memref<4xf32, #tpu.memory_space<smem>>
    %24 = math.sin %23 : f32
    %cst_7 = arith.constant 1.000000e+00 : f32
    %25 = arith.addf %cst_7, %24 : f32
    %26 = vector.broadcast %25 : f32 to vector<8x128xf32>
    %27 = arith.mulf %20, %26 : vector<8x128xf32>
    %c3 = arith.constant 3 : index
    %c0_8 = arith.constant 0 : index
    %c0_9 = arith.constant 0 : index
    %28 = vector.load %arg2[%c3, %c0_8, %c0_9] : memref<4x8x128xf32, #tpu.memory_space<vmem>>, vector<1x8x128xf32>
    %29 = vector.shape_cast %28 : vector<1x8x128xf32> to vector<8x128xf32>
    %c3_i32 = arith.constant 3 : i32
    %30 = arith.addi %0, %c3_i32 : i32
    %31 = arith.index_cast %30 : i32 to index
    %32 = memref.load %arg1[%31] : memref<4xf32, #tpu.memory_space<smem>>
    %33 = math.sin %32 : f32
    %cst_10 = arith.constant 1.000000e+00 : f32
    %34 = arith.addf %cst_10, %33 : f32
    %35 = vector.broadcast %34 : f32 to vector<8x128xf32>
    %36 = arith.mulf %29, %35 : vector<8x128xf32>
    %37 = vector.shape_cast %9 : vector<8x128xf32> to vector<1x8x128xf32>
    %38 = vector.shape_cast %18 : vector<8x128xf32> to vector<1x8x128xf32>
    %39 = vector.shape_cast %27 : vector<8x128xf32> to vector<1x8x128xf32>
    %40 = vector.shape_cast %36 : vector<8x128xf32> to vector<1x8x128xf32>
    %41 = tpu.concatenate %37, %38, %39, %40 in 0 : vector<1x8x128xf32>, vector<1x8x128xf32>, vector<1x8x128xf32>, vector<1x8x128xf32> -> vector<4x8x128xf32>
    %c0_11 = arith.constant 0 : index
    %c0_12 = arith.constant 0 : index
    %42 = vector.load %arg3[%c0_11, %c0_12] : memref<6x128xf32, #tpu.memory_space<vmem>>, vector<1x128xf32>
    %c1_13 = arith.constant 1 : index
    %c0_14 = arith.constant 0 : index
    %43 = vector.load %arg3[%c1_13, %c0_14] : memref<6x128xf32, #tpu.memory_space<vmem>>, vector<1x128xf32>
    %c2_15 = arith.constant 2 : index
    %c0_16 = arith.constant 0 : index
    %44 = vector.load %arg3[%c2_15, %c0_16] : memref<6x128xf32, #tpu.memory_space<vmem>>, vector<1x128xf32>
    %cst_17 = arith.constant dense<0.000000e+00> : vector<4x128xf32>
    %45 = vector.multi_reduction <add>, %41, %cst_17 [1] : vector<4x8x128xf32> to vector<4x128xf32>
    %46 = vector.shape_cast %45 : vector<4x128xf32> to vector<4x1x128xf32>
    %cst_18 = arith.constant 8.000000e+00 : f32
    %47 = vector.broadcast %cst_18 : f32 to vector<4x1x128xf32>
    %48 = arith.divf %46, %47 : vector<4x1x128xf32>
    %49 = arith.mulf %41, %41 : vector<4x8x128xf32>
    %cst_19 = arith.constant dense<0.000000e+00> : vector<4x128xf32>
    %50 = vector.multi_reduction <add>, %49, %cst_19 [1] : vector<4x8x128xf32> to vector<4x128xf32>
    %51 = vector.shape_cast %50 : vector<4x128xf32> to vector<4x1x128xf32>
    %cst_20 = arith.constant 8.000000e+00 : f32
    %52 = vector.broadcast %cst_20 : f32 to vector<4x1x128xf32>
    %53 = arith.divf %51, %52 : vector<4x1x128xf32>
    %54 = arith.mulf %48, %48 : vector<4x1x128xf32>
    %55 = arith.subf %53, %54 : vector<4x1x128xf32>
    %cst_21 = arith.constant 0.000000e+00 : f32
    %56 = vector.broadcast %cst_21 : f32 to vector<4x1x128xf32>
    %57 = arith.maximumf %55, %56 : vector<4x1x128xf32>
    %58 = vector.broadcast %48 : vector<4x1x128xf32> to vector<4x8x128xf32>
    %59 = arith.subf %41, %58 : vector<4x8x128xf32>
    %cst_22 = arith.constant 9.99999974E-6 : f32
    %60 = vector.broadcast %cst_22 : f32 to vector<4x1x128xf32>
    %61 = arith.addf %57, %60 : vector<4x1x128xf32>
    %62 = math.rsqrt %61 : vector<4x1x128xf32>
    %63 = vector.broadcast %62 : vector<4x1x128xf32> to vector<4x8x128xf32>
    %64 = arith.mulf %59, %63 : vector<4x8x128xf32>
    %65 = vector.shape_cast %42 : vector<1x128xf32> to vector<1x1x128xf32>
    %66 = vector.broadcast %65 : vector<1x1x128xf32> to vector<4x8x128xf32>
    %67 = arith.mulf %64, %66 : vector<4x8x128xf32>
    %68 = vector.shape_cast %43 : vector<1x128xf32> to vector<1x1x128xf32>
    %69 = vector.broadcast %68 : vector<1x1x128xf32> to vector<4x8x128xf32>
    %70 = arith.addf %67, %69 : vector<4x8x128xf32>
    %71 = vector.shape_cast %70 : vector<4x8x128xf32> to vector<32x128xf32>
    %72 = arith.truncf %71 : vector<32x128xf32> to vector<32x128xbf16>
    %c0_23 = arith.constant 0 : index
    %c0_24 = arith.constant 0 : index
    %c0_25 = arith.constant 0 : index
    %73 = vector.load %arg4[%c0_23, %c0_24, %c0_25] : memref<2x128x128xbf16, #tpu.memory_space<vmem>>, vector<1x128x128xbf16>
    %74 = vector.shape_cast %73 : vector<1x128x128xbf16> to vector<128x128xbf16>
    %cst_26 = arith.constant dense<0.000000e+00> : vector<32x128xf32>
    %75 = tpu.matmul %72, %74, %cst_26 {dimension_numbers = #tpu.dot_dimension_numbers<[1], [0], [0], [1], [0, 0, 1, 1], [], []>} : vector<32x128xbf16>, vector<128x128xbf16>, vector<32x128xf32> -> vector<32x128xf32>
    %76 = vector.shape_cast %75 : vector<32x128xf32> to vector<4x8x128xf32>
    %77 = vector.shape_cast %44 : vector<1x128xf32> to vector<1x1x128xf32>
    %78 = vector.broadcast %77 : vector<1x1x128xf32> to vector<4x8x128xf32>
    %79 = arith.addf %76, %78 : vector<4x8x128xf32>
    %80 = math.exp %79 : vector<4x8x128xf32>
    %cst_27 = arith.constant 1.000000e+00 : f32
    %81 = vector.broadcast %cst_27 : f32 to vector<4x8x128xf32>
    %82 = arith.addf %81, %80 : vector<4x8x128xf32>
    %cst_28 = arith.constant 1.000000e+00 : f32
    %83 = vector.broadcast %cst_28 : f32 to vector<4x8x128xf32>
    %84 = arith.addf %83, %80 : vector<4x8x128xf32>
    %85 = arith.mulf %82, %84 : vector<4x8x128xf32>
    %cst_29 = arith.constant 1.000000e+00 : f32
    %86 = vector.broadcast %cst_29 : f32 to vector<4x8x128xf32>
    %87 = arith.addf %85, %86 : vector<4x8x128xf32>
    %88 = tpu.reciprocal %87 {approx = true} : vector<4x8x128xf32> -> vector<4x8x128xf32>
    %cst_30 = arith.constant 2.000000e+00 : f32
    %89 = vector.broadcast %cst_30 : f32 to vector<4x8x128xf32>
    %90 = arith.mulf %89, %88 : vector<4x8x128xf32>
    %cst_31 = arith.constant 1.000000e+00 : f32
    %91 = vector.broadcast %cst_31 : f32 to vector<4x8x128xf32>
    %92 = arith.subf %91, %90 : vector<4x8x128xf32>
    %93 = arith.mulf %79, %92 : vector<4x8x128xf32>
    %c3_32 = arith.constant 3 : index
    %c0_33 = arith.constant 0 : index
    %94 = vector.load %arg3[%c3_32, %c0_33] : memref<6x128xf32, #tpu.memory_space<vmem>>, vector<1x128xf32>
    %c4 = arith.constant 4 : index
    %c0_34 = arith.constant 0 : index
    %95 = vector.load %arg3[%c4, %c0_34] : memref<6x128xf32, #tpu.memory_space<vmem>>, vector<1x128xf32>
    %c5 = arith.constant 5 : index
    %c0_35 = arith.constant 0 : index
    %96 = vector.load %arg3[%c5, %c0_35] : memref<6x128xf32, #tpu.memory_space<vmem>>, vector<1x128xf32>
    %cst_36 = arith.constant dense<0.000000e+00> : vector<4x128xf32>
    %97 = vector.multi_reduction <add>, %93, %cst_36 [1] : vector<4x8x128xf32> to vector<4x128xf32>
    %98 = vector.shape_cast %97 : vector<4x128xf32> to vector<4x1x128xf32>
    %cst_37 = arith.constant 8.000000e+00 : f32
    %99 = vector.broadcast %cst_37 : f32 to vector<4x1x128xf32>
    %100 = arith.divf %98, %99 : vector<4x1x128xf32>
    %101 = arith.mulf %93, %93 : vector<4x8x128xf32>
    %cst_38 = arith.constant dense<0.000000e+00> : vector<4x128xf32>
    %102 = vector.multi_reduction <add>, %101, %cst_38 [1] : vector<4x8x128xf32> to vector<4x128xf32>
    %103 = vector.shape_cast %102 : vector<4x128xf32> to vector<4x1x128xf32>
    %cst_39 = arith.constant 8.000000e+00 : f32
    %104 = vector.broadcast %cst_39 : f32 to vector<4x1x128xf32>
    %105 = arith.divf %103, %104 : vector<4x1x128xf32>
    %106 = arith.mulf %100, %100 : vector<4x1x128xf32>
    %107 = arith.subf %105, %106 : vector<4x1x128xf32>
    %cst_40 = arith.constant 0.000000e+00 : f32
    %108 = vector.broadcast %cst_40 : f32 to vector<4x1x128xf32>
    %109 = arith.maximumf %107, %108 : vector<4x1x128xf32>
    %110 = vector.broadcast %100 : vector<4x1x128xf32> to vector<4x8x128xf32>
    %111 = arith.subf %93, %110 : vector<4x8x128xf32>
    %cst_41 = arith.constant 9.99999974E-6 : f32
    %112 = vector.broadcast %cst_41 : f32 to vector<4x1x128xf32>
    %113 = arith.addf %109, %112 : vector<4x1x128xf32>
    %114 = math.rsqrt %113 : vector<4x1x128xf32>
    %115 = vector.broadcast %114 : vector<4x1x128xf32> to vector<4x8x128xf32>
    %116 = arith.mulf %111, %115 : vector<4x8x128xf32>
    %117 = vector.shape_cast %94 : vector<1x128xf32> to vector<1x1x128xf32>
    %118 = vector.broadcast %117 : vector<1x1x128xf32> to vector<4x8x128xf32>
    %119 = arith.mulf %116, %118 : vector<4x8x128xf32>
    %120 = vector.shape_cast %95 : vector<1x128xf32> to vector<1x1x128xf32>
    %121 = vector.broadcast %120 : vector<1x1x128xf32> to vector<4x8x128xf32>
    %122 = arith.addf %119, %121 : vector<4x8x128xf32>
    %123 = vector.shape_cast %122 : vector<4x8x128xf32> to vector<32x128xf32>
    %124 = arith.truncf %123 : vector<32x128xf32> to vector<32x128xbf16>
    %c1_42 = arith.constant 1 : index
    %c0_43 = arith.constant 0 : index
    %c0_44 = arith.constant 0 : index
    %125 = vector.load %arg4[%c1_42, %c0_43, %c0_44] : memref<2x128x128xbf16, #tpu.memory_space<vmem>>, vector<1x128x128xbf16>
    %126 = vector.shape_cast %125 : vector<1x128x128xbf16> to vector<128x128xbf16>
    %cst_45 = arith.constant dense<0.000000e+00> : vector<32x128xf32>
    %127 = tpu.matmul %124, %126, %cst_45 {dimension_numbers = #tpu.dot_dimension_numbers<[1], [0], [0], [1], [0, 0, 1, 1], [], []>} : vector<32x128xbf16>, vector<128x128xbf16>, vector<32x128xf32> -> vector<32x128xf32>
    %128 = vector.shape_cast %127 : vector<32x128xf32> to vector<4x8x128xf32>
    %129 = vector.shape_cast %96 : vector<1x128xf32> to vector<1x1x128xf32>
    %130 = vector.broadcast %129 : vector<1x1x128xf32> to vector<4x8x128xf32>
    %131 = arith.addf %128, %130 : vector<4x8x128xf32>
    %c0_46 = arith.constant 0 : index
    %c0_47 = arith.constant 0 : index
    %c0_48 = arith.constant 0 : index
    %132 = vector.load %arg5[%c0_46, %c0_47, %c0_48] : memref<4x8x128xf32, #tpu.memory_space<vmem>>, vector<4x8x128xf32>
    tpu.vector_store %arg5[%c0_46, %c0_47, %c0_48], %131 {strides = array<i32>} : memref<4x8x128xf32, #tpu.memory_space<vmem>>, vector<4x8x128xf32>,
    return
  }
  func.func @transform_0(%arg0: i32, %arg1: memref<4xf32, #tpu.memory_space<smem>>) -> (i32, i32, i32) {
    %c0_i32 = arith.constant 0 : i32
    %c0_i32_0 = arith.constant 0 : i32
    %c0_i32_1 = arith.constant 0 : i32
    return %arg0, %c0_i32, %c0_i32_0 : i32, i32, i32
  }
  func.func @transform_1(%arg0: i32, %arg1: memref<4xf32, #tpu.memory_space<smem>>) -> (i32, i32) {
    %c0_i32 = arith.constant 0 : i32
    %c0_i32_0 = arith.constant 0 : i32
    %c0_i32_1 = arith.constant 0 : i32
    return %c0_i32, %c0_i32_0 : i32, i32
  }
  func.func @transform_2(%arg0: i32, %arg1: memref<4xf32, #tpu.memory_space<smem>>) -> (i32, i32, i32) {
    %c0_i32 = arith.constant 0 : i32
    %c0_i32_0 = arith.constant 0 : i32
    %c0_i32_1 = arith.constant 0 : i32
    %c0_i32_2 = arith.constant 0 : i32
    return %c0_i32, %c0_i32_0, %c0_i32_1 : i32, i32, i32
  }
  func.func @transform_3(%arg0: i32, %arg1: memref<4xf32, #tpu.memory_space<smem>>) -> (i32, i32, i32) {
    %c0_i32 = arith.constant 0 : i32
    %c0_i32_0 = arith.constant 0 : i32
    %c0_i32_1 = arith.constant 0 : i32
    return %arg0, %c0_i32, %c0_i32_0 : i32, i32, i32
  }
}

</mosaic_0001>

<llo_original>
// kernel: func_time_forward.1
$region0: #{func_time_forward.1}
  #allocation0 [shape = 'u32[]', space=smem, size = 0x4, offset = 0x4, fixed_abs, tag = 'smem constant byte address 0x4 - core index']
  #allocation1 [shape = 'u32[144,128]{1,0:T(1,128)}', space=vmem, size = 0x12000, scoped, tag = 'internal scratch']
  #allocation2 [shape = 's32[1]{0}', space=sflag, size = 0x4, scoped, tag = 'scoped memory for func_time_forward.1']
  #allocation3 [shape = 'u8[512]{0}', space=smem, size = 0x200, scoped, tag = 'prefetched SMEM operand 0']
  %s0 = inlined_call_operand.hbm [shape: f32[4], index: 0, kind: input, shape index: {}]
  %s1 = inlined_call_operand.hbm [shape: f32[4,8,128], index: 1, kind: input, shape index: {}]
  %s2 = inlined_call_operand.hbm [shape: f32[6,128], index: 2, kind: input, shape index: {}]
  %s3 = inlined_call_operand.hbm [shape: bf16[2,128,128], index: 3, kind: input, shape index: {}]
  %s4 = inlined_call_operand.hbm [shape: f32[4,8,128], index: 4, kind: output, shape index: {}]
  %s5 = sld [smem:[#allocation0]]
  $region34: #{func_time_forward.1} parent=0
    _
  %s7 = ssub.s32 1, %s5
  %s8 = scalar_select 0, %s7, %s5
  %10 = dma.hbm_to_smem %s0, 16, [#allocation3], [#allocation2]
  %11 = dma.done [#allocation2], 16
  %12 = sfence
  $region1: #{func_time_forward.1} parent=0
    #allocation4 [shape = 'u8[16384]{0}', space=vmem, size = 0x4000, scoped, tag = 'input window, operand 1, single buffered']
    #allocation5 [shape = 's32[1]{0}', space=sflag, size = 0x4, scoped, tag = 'scoped memory for func_time_forward.1']
    #allocation6 [shape = 's32[1]{0}', space=sflag, size = 0x4, scoped, tag = 'scoped memory for func_time_forward.1']
    #allocation7 [shape = 'u8[4096]{0}', space=vmem, size = 0x1000, scoped, tag = 'input window, operand 2, single buffered']
    #allocation8 [shape = 's32[1]{0}', space=sflag, size = 0x4, scoped, tag = 'scoped memory for func_time_forward.1']
    #allocation9 [shape = 'u8[65536]{0}', space=vmem, size = 0x10000, scoped, tag = 'input window, operand 3, single buffered']
    #allocation10 [shape = 'u8[16384]{0}', space=vmem, size = 0x4000, scoped, tag = 'output window, operand 0, single buffered']
    %13 = vsyncpa [#allocation5], 0
    %14 = vsyncpa [#allocation8], 0
    %15 = vsyncpa [#allocation6], 0
    // Predicated region
    $region2: #{func_time_forward.1} parent=1 // pred_check
      _
    $region3: #{func_time_forward.1} parent=1 // pred_check_branch
      %17 = sbr.rel (0) target = $region5
    $region4: #{func_time_forward.1} parent=1 // pred_region
      %s19 = ssub.s32 512, 512
      %20 = vsyncadd [#allocation5], %s19
      %s21 = sshll.u32 [#allocation4], 4
      %s22 = int_to_ptr.vmem [resolvable:$true] %s21
      %27 = dma.hbm_to_vmem [thread:$0]  %s1, 512, %s22, [#allocation5], 128, 128, 8
    $region5: #{func_time_forward.1} parent=1 // pred_fallthru
      _
    // Predicated region
    $region6: #{func_time_forward.1} parent=1 // pred_check
      _
    $region7: #{func_time_forward.1} parent=1 // pred_check_branch
      %29 = sbr.rel (0) target = $region9
    $region8: #{func_time_forward.1} parent=1 // pred_region
      %s31 = ssub.s32 128, 128
      %32 = vsyncadd [#allocation8], %s31
      %s34 = sshll.u32 [#allocation7], 4
      %s35 = int_to_ptr.vmem [resolvable:$true] %s34
      %37 = dma.hbm_to_vmem [thread:$0]  %s2, 128, %s35, [#allocation8]
    $region9: #{func_time_forward.1} parent=1 // pred_fallthru
      _
    // Predicated region
    $region10: #{func_time_forward.1} parent=1 // pred_check
      _
    $region11: #{func_time_forward.1} parent=1 // pred_check_branch
      %39 = sbr.rel (0) target = $region13
    $region12: #{func_time_forward.1} parent=1 // pred_region
      %s41 = ssub.s32 2048, 2048
      %42 = vsyncadd [#allocation8], %s41
      %s43 = sshll.u32 [#allocation9], 4
      %s44 = int_to_ptr.vmem [resolvable:$true] %s43
      %49 = dma.hbm_to_vmem [thread:$0]  %s3, 2048, %s44, [#allocation8], 64, 64, 4
    $region13: #{func_time_forward.1} parent=1 // pred_fallthru
      _
    // Predicated region
    $region14: #{func_time_forward.1} parent=1 // pred_check
      _
    $region15: #{func_time_forward.1} parent=1 // pred_check_branch
      %51 = sbr.rel (0) target = $region17
    $region16: #{func_time_forward.1} parent=1 // pred_region
      %52 = dma.done [#allocation5], 512
    $region17: #{func_time_forward.1} parent=1 // pred_fallthru
      _
    // Predicated region
    $region18: #{func_time_forward.1} parent=1 // pred_check
      _
    $region19: #{func_time_forward.1} parent=1 // pred_check_branch
      %54 = sbr.rel (0) target = $region21
    $region20: #{func_time_forward.1} parent=1 // pred_region
      %55 = dma.done [#allocation8], 128
    $region21: #{func_time_forward.1} parent=1 // pred_fallthru
      _
    // Predicated region
    $region22: #{func_time_forward.1} parent=1 // pred_check
      _
    $region23: #{func_time_forward.1} parent=1 // pred_check_branch
      %57 = sbr.rel (0) target = $region25
    $region24: #{func_time_forward.1} parent=1 // pred_region
      %58 = dma.done [#allocation8], 2048
    $region25: #{func_time_forward.1} parent=1 // pred_fallthru
      _
    %s60 = smul.u32 0, 4
    %v61 = vld [vmem:[#allocation4] sm:$0xff]
    %s62 = sld [smem:[#allocation3 + %s60]]
    %v63 = vstv %s62
    %v64 = vand.u32 2147483647, %v63
    %vm65 = vcmp.le.f32.partialorder %v64, 0.7853982
    %vm66 = vcmp.lt.s32.totalorder %v63, 0
    %v67 = vand.u32 %v63, 2139095040
    %v68 = vshrl.u32 %v67, 23
    %v69 = vsub.s32 %v68, 127
    %v70 = vand.u32 2147483647, %v63
    %v71 = vand.u32 %v70, 8388607
    %v72 = vor.u32 %v71, 8388608
    %v73 = vsub.s32 0, %v72
    %v74 = vadd.s32 %v69, 1
    %vm75 = vcmp.gt.s32.totalorder %v74, 0
    %v76 = vsel %vm75, %v74, 0
    %v77 = vshrl.u32 %v76, 5
    %v78 = vand.u32 %v76, 31
    %v79 = vsub.s32 32, %v78
    %v80 = vshrl.u32 683565275, %v79
    %v81 = vshll.u32 683565275, %v78
    %v82 = vshrl.u32 2475754826, %v79
    %v83 = vor.u32 %v81, %v82
    %v84 = vshll.u32 2475754826, %v78
    %v85 = vshrl.u32 2131351028, %v79
    %v86 = vor.u32 %v84, %v85
    %v87 = vshll.u32 2131351028, %v78
    %v88 = vshrl.u32 2102212464, %v79
    %v89 = vor.u32 %v87, %v88
    %v90 = vshll.u32 2102212464, %v78
    %v91 = vshrl.u32 920167782, %v79
    %v92 = vor.u32 %v90, %v91
    %v93 = vshll.u32 920167782, %v78
    %v94 = vshrl.u32 1326507024, %v79
    %v95 = vor.u32 %v93, %v94
    %vm96 = vcmp.lt.s32.totalorder %v77, 1
    %vm97 = vcmp.lt.s32.totalorder %v77, 2
    %vm98 = vcmp.lt.s32.totalorder %v77, 3
    %vm99 = vcmp.lt.s32.totalorder %v77, 4
    %v100 = vsel %vm96, %v80, %v83
    %v101 = vsel %vm99, %v89, 2102212464
    %v102 = vsel %vm98, %v86, %v101
    %v103 = vsel %vm97, %v100, %v102
    %v104 = vsel %vm96, %v83, %v86
    %v105 = vsel %vm99, %v92, 920167782
    %v106 = vsel %vm98, %v89, %v105
    %v107 = vsel %vm97, %v104, %v106
    %v108 = vsel %vm96, %v86, %v89
    %v109 = vsel %vm99, %v95, 1326507024
    %v110 = vsel %vm98, %v92, %v109
    %v111 = vsel %vm97, %v108, %v110
    %v112 = vshll.u32 %v72, 8
    %v113 = vmul.u32.u64.compose %v112, %v111
    %v114 = vextract.low.u32 %v113
    %v115 = vextract.high.u32 %v113
    %v116 = vmul.u32.u64.compose %v112, %v107
    %v117 = vextract.low.u32 %v116
    %v118 = vextract.high.u32 %v116
    %v119 = vmul.u32 %v112, %v103
    %v120 = vadd.s32 %v115, %v117
    %vm121 = vc.u32 %v115, %v117
    %v122 = vadd.s32 %v118, 1
    %v123 = vsel %vm121, %v122, %v118
    %v124 = vadd.s32 %v119, %v123
    %v125 = vadd.s32 %v124, 536870912
    %v126 = vshrl.u32 %v125, 30
    %v127 = vshll.u32 %v126, 30
    %v128 = vsub.s32 %v124, %v127
    %vm129 = vcmp.lt.s32.totalorder %v128, 0
    %v130 = vsub.s32 0, %v128
    %v131 = vsel %vm129, %v130, %v128
    %v132 = vclz %v131
    %v133 = vsub.s32 %v132, 2
    %vm134 = vcmp.gt.s32.totalorder 0, %v133
    %v135 = vsel %vm134, 0, %v133
    %v136 = vsub.s32 32, %v135
    %v137 = vshll.u32 %v128, %v135
    %v138 = vshrl.u32 %v120, %v136
    %v139 = vor.u32 %v137, %v138
    %v140 = vsub.s32 4294967266, %v135
    %v141 = vadd.s32 %v140, 127
    %v142 = vshll.u32 %v141, 23
    %v143 = vor.u32 4788187, %v142
    %v144 = vand.u32 2147483647, %v143
    %v146 = vcvt.s32.f32 %v139
    %v147 = vmul.f32 %v146, %v144
    %v148 = vxor.u32 %v147, 2147483648
    %v149 = vsel %vm66, %v148, %v147
    %v150 = vsub.s32 4, %v126
    %v151 = vsel %vm66, %v150, %v126
    %v152 = vsel %vm65, %v63, %v149
    %v153 = vsel %vm65, 0, %v151
    %v154 = vcosq.f32.pop %v152
    %v155 = vsinq.f32.pop %v152
    %vm156 = vweird.f32 %v63
    %v157 = vadd.s32 %v153, 3
    %v158 = vand.u32 %v157, 3
    %vm159 = vcmp.lt.s32.totalorder %v158, 2
    %vm160 = vcmp.eq.s32.totalorder %v158, 0
    %v161 = vxor.u32 %v155, 2147483648
    %v162 = vsel %vm160, %v154, %v161
    %vm163 = vcmp.eq.s32.totalorder %v158, 2
    %v164 = vxor.u32 %v154, 2147483648
    %v165 = vsel %vm163, %v164, %v155
    %v166 = vsel %vm159, %v162, %v165
    %v167 = vsel %vm156, nan, %v166
    %s168 = vtos %v167
    %s169 = sadd.f32 %s168, 1.0
    %v170 = vstv %s169
    %v171 = vmul.f32 %v61, %v170
    %s172 = scalar_lea.vmem [#allocation4], 8
    %v173 = vld [vmem:[%s172] sm:$0xff]
    %s174 = sadd.s32 %s60, 1
    %s175 = sld [smem:[#allocation3 + %s174]]
    %v176 = vstv %s175
    %v177 = vand.u32 2147483647, %v176
    %vm178 = vcmp.le.f32.partialorder %v177, 0.7853982
    %vm179 = vcmp.lt.s32.totalorder %v176, 0
    %v180 = vand.u32 %v176, 2139095040
    %v181 = vshrl.u32 %v180, 23
    %v182 = vsub.s32 %v181, 127
    %v183 = vand.u32 2147483647, %v176
    %v184 = vand.u32 %v183, 8388607
    %v185 = vor.u32 %v184, 8388608
    %v186 = vsub.s32 0, %v185
    %v187 = vadd.s32 %v182, 1
    %vm188 = vcmp.gt.s32.totalorder %v187, 0
    %v189 = vsel %vm188, %v187, 0
    %v190 = vshrl.u32 %v189, 5
    %v191 = vand.u32 %v189, 31
    %v192 = vsub.s32 32, %v191
    %v193 = vshrl.u32 683565275, %v192
    %v194 = vshll.u32 683565275, %v191
    %v195 = vshrl.u32 2475754826, %v192
    %v196 = vor.u32 %v194, %v195
    %v197 = vshll.u32 2475754826, %v191
    %v198 = vshrl.u32 2131351028, %v192
    %v199 = vor.u32 %v197, %v198
    %v200 = vshll.u32 2131351028, %v191
    %v201 = vshrl.u32 2102212464, %v192
    %v202 = vor.u32 %v200, %v201
    %v203 = vshll.u32 2102212464, %v191
    %v204 = vshrl.u32 920167782, %v192
    %v205 = vor.u32 %v203, %v204
    %v206 = vshll.u32 920167782, %v191
    %v207 = vshrl.u32 1326507024, %v192
    %v208 = vor.u32 %v206, %v207
    %vm209 = vcmp.lt.s32.totalorder %v190, 1
    %vm210 = vcmp.lt.s32.totalorder %v190, 2
    %vm211 = vcmp.lt.s32.totalorder %v190, 3
    %vm212 = vcmp.lt.s32.totalorder %v190, 4
    %v213 = vsel %vm209, %v193, %v196
    %v214 = vsel %vm212, %v202, 2102212464
    %v215 = vsel %vm211, %v199, %v214
    %v216 = vsel %vm210, %v213, %v215
    %v217 = vsel %vm209, %v196, %v199
    %v218 = vsel %vm212, %v205, 920167782
    %v219 = vsel %vm211, %v202, %v218
    %v220 = vsel %vm210, %v217, %v219
    %v221 = vsel %vm209, %v199, %v202
    %v222 = vsel %vm212, %v208, 1326507024
    %v223 = vsel %vm211, %v205, %v222
    %v224 = vsel %vm210, %v221, %v223
    %v225 = vshll.u32 %v185, 8
    %v226 = vmul.u32.u64.compose %v225, %v224
    %v227 = vextract.low.u32 %v226
    %v228 = vextract.high.u32 %v226
    %v229 = vmul.u32.u64.compose %v225, %v220
    %v230 = vextract.low.u32 %v229
    %v231 = vextract.high.u32 %v229
    %v232 = vmul.u32 %v225, %v216
    %v233 = vadd.s32 %v228, %v230
    %vm234 = vc.u32 %v228, %v230
    %v235 = vadd.s32 %v231, 1
    %v236 = vsel %vm234, %v235, %v231
    %v237 = vadd.s32 %v232, %v236
    %v238 = vadd.s32 %v237, 536870912
    %v239 = vshrl.u32 %v238, 30
    %v240 = vshll.u32 %v239, 30
    %v241 = vsub.s32 %v237, %v240
    %vm242 = vcmp.lt.s32.totalorder %v241, 0
    %v243 = vsub.s32 0, %v241
    %v244 = vsel %vm242, %v243, %v241
    %v245 = vclz %v244
    %v246 = vsub.s32 %v245, 2
    %vm247 = vcmp.gt.s32.totalorder 0, %v246
    %v248 = vsel %vm247, 0, %v246
    %v249 = vsub.s32 32, %v248
    %v250 = vshll.u32 %v241, %v248
    %v251 = vshrl.u32 %v233, %v249
    %v252 = vor.u32 %v250, %v251
    %v253 = vsub.s32 4294967266, %v248
    %v254 = vadd.s32 %v253, 127
    %v255 = vshll.u32 %v254, 23
    %v256 = vor.u32 4788187, %v255
    %v257 = vand.u32 2147483647, %v256
    %v259 = vcvt.s32.f32 %v252
    %v260 = vmul.f32 %v259, %v257
    %v261 = vxor.u32 %v260, 2147483648
    %v262 = vsel %vm179, %v261, %v260
    %v263 = vsub.s32 4, %v239
    %v264 = vsel %vm179, %v263, %v239
    %v265 = vsel %vm178, %v176, %v262
    %v266 = vsel %vm178, 0, %v264
    %v267 = vcosq.f32.pop %v265
    %v268 = vsinq.f32.pop %v265
    %vm269 = vweird.f32 %v176
    %v270 = vadd.s32 %v266, 3
    %v271 = vand.u32 %v270, 3
    %vm272 = vcmp.lt.s32.totalorder %v271, 2
    %vm273 = vcmp.eq.s32.totalorder %v271, 0
    %v274 = vxor.u32 %v268, 2147483648
    %v275 = vsel %vm273, %v267, %v274
    %vm276 = vcmp.eq.s32.totalorder %v271, 2
    %v277 = vxor.u32 %v267, 2147483648
    %v278 = vsel %vm276, %v277, %v268
    %v279 = vsel %vm272, %v275, %v278
    %v280 = vsel %vm269, nan, %v279
    %s281 = vtos %v280
    %s282 = sadd.f32 %s281, 1.0
    %v283 = vstv %s282
    %v284 = vmul.f32 %v173, %v283
    %s285 = scalar_lea.vmem [#allocation4], 16
    %v286 = vld [vmem:[%s285] sm:$0xff]
    %s287 = sadd.s32 %s60, 2
    %s288 = sld [smem:[#allocation3 + %s287]]
    %v289 = vstv %s288
    %v290 = vand.u32 2147483647, %v289
    %vm291 = vcmp.le.f32.partialorder %v290, 0.7853982
    %vm292 = vcmp.lt.s32.totalorder %v289, 0
    %v293 = vand.u32 %v289, 2139095040
    %v294 = vshrl.u32 %v293, 23
    %v295 = vsub.s32 %v294, 127
    %v296 = vand.u32 2147483647, %v289
    %v297 = vand.u32 %v296, 8388607
    %v298 = vor.u32 %v297, 8388608
    %v299 = vsub.s32 0, %v298
    %v300 = vadd.s32 %v295, 1
    %vm301 = vcmp.gt.s32.totalorder %v300, 0
    %v302 = vsel %vm301, %v300, 0
    %v303 = vshrl.u32 %v302, 5
    %v304 = vand.u32 %v302, 31
    %v305 = vsub.s32 32, %v304
    %v306 = vshrl.u32 683565275, %v305
    %v307 = vshll.u32 683565275, %v304
    %v308 = vshrl.u32 2475754826, %v305
    %v309 = vor.u32 %v307, %v308
    %v310 = vshll.u32 2475754826, %v304
    %v311 = vshrl.u32 2131351028, %v305
    %v312 = vor.u32 %v310, %v311
    %v313 = vshll.u32 2131351028, %v304
    %v314 = vshrl.u32 2102212464, %v305
    %v315 = vor.u32 %v313, %v314
    %v316 = vshll.u32 2102212464, %v304
    %v317 = vshrl.u32 920167782, %v305
    %v318 = vor.u32 %v316, %v317
    %v319 = vshll.u32 920167782, %v304
    %v320 = vshrl.u32 1326507024, %v305
    %v321 = vor.u32 %v319, %v320
    %vm322 = vcmp.lt.s32.totalorder %v303, 1
    %vm323 = vcmp.lt.s32.totalorder %v303, 2
    %vm324 = vcmp.lt.s32.totalorder %v303, 3
    %vm325 = vcmp.lt.s32.totalorder %v303, 4
    %v326 = vsel %vm322, %v306, %v309
    %v327 = vsel %vm325, %v315, 2102212464
    %v328 = vsel %vm324, %v312, %v327
    %v329 = vsel %vm323, %v326, %v328
    %v330 = vsel %vm322, %v309, %v312
    %v331 = vsel %vm325, %v318, 920167782
    %v332 = vsel %vm324, %v315, %v331
    %v333 = vsel %vm323, %v330, %v332
    %v334 = vsel %vm322, %v312, %v315
    %v335 = vsel %vm325, %v321, 1326507024
    %v336 = vsel %vm324, %v318, %v335
    %v337 = vsel %vm323, %v334, %v336
    %v338 = vshll.u32 %v298, 8
    %v339 = vmul.u32.u64.compose %v338, %v337
    %v340 = vextract.low.u32 %v339
    %v341 = vextract.high.u32 %v339
    %v342 = vmul.u32.u64.compose %v338, %v333
    %v343 = vextract.low.u32 %v342
    %v344 = vextract.high.u32 %v342
    %v345 = vmul.u32 %v338, %v329
    %v346 = vadd.s32 %v341, %v343
    %vm347 = vc.u32 %v341, %v343
    %v348 = vadd.s32 %v344, 1
    %v349 = vsel %vm347, %v348, %v344
    %v350 = vadd.s32 %v345, %v349
    %v351 = vadd.s32 %v350, 536870912
    %v352 = vshrl.u32 %v351, 30
    %v353 = vshll.u32 %v352, 30
    %v354 = vsub.s32 %v350, %v353
    %vm355 = vcmp.lt.s32.totalorder %v354, 0
    %v356 = vsub.s32 0, %v354
    %v357 = vsel %vm355, %v356, %v354
    %v358 = vclz %v357
    %v359 = vsub.s32 %v358, 2
    %vm360 = vcmp.gt.s32.totalorder 0, %v359
    %v361 = vsel %vm360, 0, %v359
    %v362 = vsub.s32 32, %v361
    %v363 = vshll.u32 %v354, %v361
    %v364 = vshrl.u32 %v346, %v362
    %v365 = vor.u32 %v363, %v364
    %v366 = vsub.s32 4294967266, %v361
    %v367 = vadd.s32 %v366, 127
    %v368 = vshll.u32 %v367, 23
    %v369 = vor.u32 4788187, %v368
    %v370 = vand.u32 2147483647, %v369
    %v372 = vcvt.s32.f32 %v365
    %v373 = vmul.f32 %v372, %v370
    %v374 = vxor.u32 %v373, 2147483648
    %v375 = vsel %vm292, %v374, %v373
    %v376 = vsub.s32 4, %v352
    %v377 = vsel %vm292, %v376, %v352
    %v378 = vsel %vm291, %v289, %v375
    %v379 = vsel %vm291, 0, %v377
    %v380 = vcosq.f32.pop %v378
    %v381 = vsinq.f32.pop %v378
    %vm382 = vweird.f32 %v289
    %v383 = vadd.s32 %v379, 3
    %v384 = vand.u32 %v383, 3
    %vm385 = vcmp.lt.s32.totalorder %v384, 2
    %vm386 = vcmp.eq.s32.totalorder %v384, 0
    %v387 = vxor.u32 %v381, 2147483648
    %v388 = vsel %vm386, %v380, %v387
    %vm389 = vcmp.eq.s32.totalorder %v384, 2
    %v390 = vxor.u32 %v380, 2147483648
    %v391 = vsel %vm389, %v390, %v381
    %v392 = vsel %vm385, %v388, %v391
    %v393 = vsel %vm382, nan, %v392
    %s394 = vtos %v393
    %s395 = sadd.f32 %s394, 1.0
    %v396 = vstv %s395
    %v397 = vmul.f32 %v286, %v396
    %s398 = scalar_lea.vmem [#allocation4], 24
    %v399 = vld [vmem:[%s398] sm:$0xff]
    %s400 = sadd.s32 %s60, 3
    %s401 = sld [smem:[#allocation3 + %s400]]
    %v402 = vstv %s401
    %v403 = vand.u32 2147483647, %v402
    %vm404 = vcmp.le.f32.partialorder %v403, 0.7853982
    %vm405 = vcmp.lt.s32.totalorder %v402, 0
    %v406 = vand.u32 %v402, 2139095040
    %v407 = vshrl.u32 %v406, 23
    %v408 = vsub.s32 %v407, 127
    %v409 = vand.u32 2147483647, %v402
    %v410 = vand.u32 %v409, 8388607
    %v411 = vor.u32 %v410, 8388608
    %v412 = vsub.s32 0, %v411
    %v413 = vadd.s32 %v408, 1
    %vm414 = vcmp.gt.s32.totalorder %v413, 0
    %v415 = vsel %vm414, %v413, 0
    %v416 = vshrl.u32 %v415, 5
    %v417 = vand.u32 %v415, 31
    %v418 = vsub.s32 32, %v417
    %v419 = vshrl.u32 683565275, %v418
    %v420 = vshll.u32 683565275, %v417
    %v421 = vshrl.u32 2475754826, %v418
    %v422 = vor.u32 %v420, %v421
    %v423 = vshll.u32 2475754826, %v417
    %v424 = vshrl.u32 2131351028, %v418
    %v425 = vor.u32 %v423, %v424
    %v426 = vshll.u32 2131351028, %v417
    %v427 = vshrl.u32 2102212464, %v418
    %v428 = vor.u32 %v426, %v427
    %v429 = vshll.u32 2102212464, %v417
    %v430 = vshrl.u32 920167782, %v418
    %v431 = vor.u32 %v429, %v430
    %v432 = vshll.u32 920167782, %v417
    %v433 = vshrl.u32 1326507024, %v418
    %v434 = vor.u32 %v432, %v433
    %vm435 = vcmp.lt.s32.totalorder %v416, 1
    %vm436 = vcmp.lt.s32.totalorder %v416, 2
    %vm437 = vcmp.lt.s32.totalorder %v416, 3
    %vm438 = vcmp.lt.s32.totalorder %v416, 4
    %v439 = vsel %vm435, %v419, %v422
    %v440 = vsel %vm438, %v428, 2102212464
    %v441 = vsel %vm437, %v425, %v440
    %v442 = vsel %vm436, %v439, %v441
    %v443 = vsel %vm435, %v422, %v425
    %v444 = vsel %vm438, %v431, 920167782
    %v445 = vsel %vm437, %v428, %v444
    %v446 = vsel %vm436, %v443, %v445
    %v447 = vsel %vm435, %v425, %v428
    %v448 = vsel %vm438, %v434, 1326507024
    %v449 = vsel %vm437, %v431, %v448
    %v450 = vsel %vm436, %v447, %v449
    %v451 = vshll.u32 %v411, 8
    %v452 = vmul.u32.u64.compose %v451, %v450
    %v453 = vextract.low.u32 %v452
    %v454 = vextract.high.u32 %v452
    %v455 = vmul.u32.u64.compose %v451, %v446
    %v456 = vextract.low.u32 %v455
    %v457 = vextract.high.u32 %v455
    %v458 = vmul.u32 %v451, %v442
    %v459 = vadd.s32 %v454, %v456
    %vm460 = vc.u32 %v454, %v456
    %v461 = vadd.s32 %v457, 1
    %v462 = vsel %vm460, %v461, %v457
    %v463 = vadd.s32 %v458, %v462
    %v464 = vadd.s32 %v463, 536870912
    %v465 = vshrl.u32 %v464, 30
    %v466 = vshll.u32 %v465, 30
    %v467 = vsub.s32 %v463, %v466
    %vm468 = vcmp.lt.s32.totalorder %v467, 0
    %v469 = vsub.s32 0, %v467
    %v470 = vsel %vm468, %v469, %v467
    %v471 = vclz %v470
    %v472 = vsub.s32 %v471, 2
    %vm473 = vcmp.gt.s32.totalorder 0, %v472
    %v474 = vsel %vm473, 0, %v472
    %v475 = vsub.s32 32, %v474
    %v476 = vshll.u32 %v467, %v474
    %v477 = vshrl.u32 %v459, %v475
    %v478 = vor.u32 %v476, %v477
    %v479 = vsub.s32 4294967266, %v474
    %v480 = vadd.s32 %v479, 127
    %v481 = vshll.u32 %v480, 23
    %v482 = vor.u32 4788187, %v481
    %v483 = vand.u32 2147483647, %v482
    %v485 = vcvt.s32.f32 %v478
    %v486 = vmul.f32 %v485, %v483
    %v487 = vxor.u32 %v486, 2147483648
    %v488 = vsel %vm405, %v487, %v486
    %v489 = vsub.s32 4, %v465
    %v490 = vsel %vm405, %v489, %v465
    %v491 = vsel %vm404, %v402, %v488
    %v492 = vsel %vm404, 0, %v490
    %v493 = vcosq.f32.pop %v491
    %v494 = vsinq.f32.pop %v491
    %vm495 = vweird.f32 %v402
    %v496 = vadd.s32 %v492, 3
    %v497 = vand.u32 %v496, 3
    %vm498 = vcmp.lt.s32.totalorder %v497, 2
    %vm499 = vcmp.eq.s32.totalorder %v497, 0
    %v500 = vxor.u32 %v494, 2147483648
    %v501 = vsel %vm499, %v493, %v500
    %vm502 = vcmp.eq.s32.totalorder %v497, 2
    %v503 = vxor.u32 %v493, 2147483648
    %v504 = vsel %vm502, %v503, %v494
    %v505 = vsel %vm498, %v501, %v504
    %v506 = vsel %vm495, nan, %v505
    %s507 = vtos %v506
    %s508 = sadd.f32 %s507, 1.0
    %v509 = vstv %s508
    %v510 = vmul.f32 %v399, %v509
    %v511 = vld [vmem:[#allocation7] sm:$0x1]
    %v512 = vld [vmem:[#allocation7 + $0x1] sm:$0x1]
    %v513 = vld [vmem:[#allocation7 + $0x2] sm:$0x1]
    %v514 = vrot.slane %v171, 4
    %v515 = vadd.f32 %v171, %v514
    %v516 = vrot.slane %v515, 2
    %v517 = vadd.f32 %v515, %v516
    %v518 = vrot.slane %v517, 1
    %v519 = vadd.f32 %v517, %v518
    %v520 = vrot.slane %v284, 4
    %v521 = vadd.f32 %v284, %v520
    %v522 = vrot.slane %v521, 2
    %v523 = vadd.f32 %v521, %v522
    %v524 = vrot.slane %v523, 1
    %v525 = vadd.f32 %v523, %v524
    %v526 = vrot.slane %v397, 4
    %v527 = vadd.f32 %v397, %v526
    %v528 = vrot.slane %v527, 2
    %v529 = vadd.f32 %v527, %v528
    %v530 = vrot.slane %v529, 1
    %v531 = vadd.f32 %v529, %v530
    %v532 = vrot.slane %v510, 4
    %v533 = vadd.f32 %v510, %v532
    %v534 = vrot.slane %v533, 2
    %v535 = vadd.f32 %v533, %v534
    %v536 = vrot.slane %v535, 1
    %v537 = vadd.f32 %v535, %v536
    %v538 = vrcp.pop 8.0
    %v539 = vmul.f32 %v519, %v538
    %v540 = vmul.f32 %v525, %v538
    %v541 = vmul.f32 %v531, %v538
    %v542 = vmul.f32 %v537, %v538
    %v543 = vmul.f32 %v171, %v171
    %v544 = vmul.f32 %v284, %v284
    %v545 = vmul.f32 %v397, %v397
    %v546 = vmul.f32 %v510, %v510
    %v547 = vrot.slane %v543, 4
    %v548 = vadd.f32 %v543, %v547
    %v549 = vrot.slane %v548, 2
    %v550 = vadd.f32 %v548, %v549
    %v551 = vrot.slane %v550, 1
    %v552 = vadd.f32 %v550, %v551
    %v553 = vrot.slane %v544, 4
    %v554 = vadd.f32 %v544, %v553
    %v555 = vrot.slane %v554, 2
    %v556 = vadd.f32 %v554, %v555
    %v557 = vrot.slane %v556, 1
    %v558 = vadd.f32 %v556, %v557
    %v559 = vrot.slane %v545, 4
    %v560 = vadd.f32 %v545, %v559
    %v561 = vrot.slane %v560, 2
    %v562 = vadd.f32 %v560, %v561
    %v563 = vrot.slane %v562, 1
    %v564 = vadd.f32 %v562, %v563
    %v565 = vrot.slane %v546, 4
    %v566 = vadd.f32 %v546, %v565
    %v567 = vrot.slane %v566, 2
    %v568 = vadd.f32 %v566, %v567
    %v569 = vrot.slane %v568, 1
    %v570 = vadd.f32 %v568, %v569
    %v571 = vmul.f32 %v552, %v538
    %v572 = vmul.f32 %v558, %v538
    %v573 = vmul.f32 %v564, %v538
    %v574 = vmul.f32 %v570, %v538
    %v575 = vmul.f32 %v539, %v539
    %v576 = vmul.f32 %v540, %v540
    %v577 = vmul.f32 %v541, %v541
    %v578 = vmul.f32 %v542, %v542
    %v579 = vsub.f32 %v571, %v575
    %v580 = vsub.f32 %v572, %v576
    %v581 = vsub.f32 %v573, %v577
    %v582 = vsub.f32 %v574, %v578
    %v583 = vmax.f32 %v579, 0.0
    %v584 = vmax.f32 %v580, 0.0
    %v585 = vmax.f32 %v581, 0.0
    %v586 = vmax.f32 %v582, 0.0
    %v587 = vsub.f32 %v171, %v539
    %v588 = vsub.f32 %v284, %v540
    %v589 = vsub.f32 %v397, %v541
    %v590 = vsub.f32 %v510, %v542
    %v591 = vadd.f32 %v583, 1e-05
    %v592 = vadd.f32 %v584, 1e-05
    %v593 = vadd.f32 %v585, 1e-05
    %v594 = vadd.f32 %v586, 1e-05
    %v595 = vrsqrt.pop %v591
    %v596 = vrsqrt.pop %v592
    %v597 = vrsqrt.pop %v593
    %v598 = vrsqrt.pop %v594
    %v599 = vmul.f32 %v587, %v595
    %v600 = vmul.f32 %v588, %v596
    %v601 = vmul.f32 %v589, %v597
    %v602 = vmul.f32 %v590, %v598
    %v603 = vlaneseq
    %v604 = vshrl.u32 %v603, 7
    %v605 = vsub.s32 0, %v604
    %v606 = vrot.slane %v511, %v605
    %v607 = vmul.f32 %v599, %v606
    %v608 = vmul.f32 %v600, %v606
    %v609 = vmul.f32 %v601, %v606
    %v610 = vmul.f32 %v602, %v606
    %v611 = vlaneseq
    %v612 = vshrl.u32 %v611, 7
    %v613 = vsub.s32 0, %v612
    %v614 = vrot.slane %v512, %v613
    %v615 = vadd.f32 %v607, %v614
    %v616 = vadd.f32 %v608, %v614
    %v617 = vadd.f32 %v609, %v614
    %v618 = vadd.f32 %v610, %v614
    %v619 = vpack.c.bf16 %v616, %v615
    %v620 = vpack.c.bf16 %v618, %v617
    %v621 = vld [vmem:[#allocation9] sm:$0xf]
    %v622 = vld [vmem:[#allocation9 + $0x4] sm:$0xf]
    %v623 = vld [vmem:[#allocation9 + $0x8] sm:$0xf]
    %v624 = vld [vmem:[#allocation9 + $0xc] sm:$0xf]
    %v625 = vld [vmem:[#allocation9 + $0x10] sm:$0xf]
    %v626 = vld [vmem:[#allocation9 + $0x14] sm:$0xf]
    %v627 = vld [vmem:[#allocation9 + $0x18] sm:$0xf]
    %v628 = vld [vmem:[#allocation9 + $0x1c] sm:$0xf]
    %v629 = vld [vmem:[#allocation9 + $0x20] sm:$0xf]
    %v630 = vld [vmem:[#allocation9 + $0x24] sm:$0xf]
    %v631 = vld [vmem:[#allocation9 + $0x28] sm:$0xf]
    %v632 = vld [vmem:[#allocation9 + $0x2c] sm:$0xf]
    %v633 = vld [vmem:[#allocation9 + $0x30] sm:$0xf]
    %v634 = vld [vmem:[#allocation9 + $0x34] sm:$0xf]
    %v635 = vld [vmem:[#allocation9 + $0x38] sm:$0xf]
    %v636 = vld [vmem:[#allocation9 + $0x3c] sm:$0xf]
    %v653 = vunpack.c.l.b16 %v621
    %v654 = vunpack.c.l.b16 %v622
    %v655 = vunpack.c.l.b16 %v623
    %v656 = vunpack.c.l.b16 %v624
    %v657 = vunpack.c.l.b16 %v625
    %v658 = vunpack.c.l.b16 %v626
    %v659 = vunpack.c.l.b16 %v627
    %v660 = vunpack.c.l.b16 %v628
    %v661 = vunpack.c.l.b16 %v629
    %v662 = vunpack.c.l.b16 %v630
    %v663 = vunpack.c.l.b16 %v631
    %v664 = vunpack.c.l.b16 %v632
    %v665 = vunpack.c.l.b16 %v633
    %v666 = vunpack.c.l.b16 %v634
    %v667 = vunpack.c.l.b16 %v635
    %v668 = vunpack.c.l.b16 %v636
    %v669 = vpack.c.b16 %v654, %v653
    %v670 = vpack.c.b16 %v656, %v655
    %v671 = vpack.c.b16 %v658, %v657
    %v672 = vpack.c.b16 %v660, %v659
    %v673 = vpack.c.b16 %v662, %v661
    %v674 = vpack.c.b16 %v664, %v663
    %v675 = vpack.c.b16 %v666, %v665
    %v676 = vpack.c.b16 %v668, %v667
    %685 = vmatprep.subr.bf16.mxu0 0
    %686 = vmatpush1.bf16.msra.mxu0 %v676
    %687 = vmatprep.subr.bf16.mxu0 0
    %688 = vmatpush1.bf16.msra.mxu0 %v675
    %689 = vmatprep.subr.bf16.mxu0 0
    %690 = vmatpush1.bf16.msra.mxu0 %v674
    %691 = vmatprep.subr.bf16.mxu0 0
    %692 = vmatpush1.bf16.msra.mxu0 %v673
    %693 = vmatprep.subr.bf16.mxu0 0
    %694 = vmatpush1.bf16.msra.mxu0 %v672
    %695 = vmatprep.subr.bf16.mxu0 0
    %696 = vmatpush1.bf16.msra.mxu0 %v671
    %697 = vmatprep.subr.bf16.mxu0 0
    %698 = vmatpush1.bf16.msra.mxu0 %v670
    %699 = vmatprep.subr.bf16.mxu0 0
    %700 = vmatpush1.bf16.msra.mxu0 %v669
    %701 = vmatprep.subr.bf16.mxu0 0
    %702 = vmatpush2.bf16.msra.mxu0 0
    %703 = vmatprep.subr.bf16.mxu0 0
    %704 = vmatpush2.bf16.msra.mxu0 0
    %705 = vmatprep.subr.bf16.mxu0 0
    %706 = vmatpush2.bf16.msra.mxu0 0
    %707 = vmatprep.subr.bf16.mxu0 0
    %708 = vmatpush2.bf16.msra.mxu0 0
    %709 = vmatprep.subr.bf16.mxu0 0
    %710 = vmatpush2.bf16.msra.mxu0 0
    %711 = vmatprep.subr.bf16.mxu0 0
    %712 = vmatpush2.bf16.msra.mxu0 0
    %713 = vmatprep.subr.bf16.mxu0 0
    %714 = vmatpush2.bf16.msra.mxu0 0
    %715 = vmatprep.subr.bf16.mxu0 0
    %716 = vmatpush2.bf16.msra.mxu0 0
    %717 = vmatprep.mubr.bf16.mxu0 0
    %718 = vmatmul.mubr.bf16.gmra.mxu0 %v619
    %v719 = vpop.f32.mrf.mxu0
    %v720 = vadd.f32 0.0, %v719
    %v721 = vpop.f32.mrf.mxu0
    %v722 = vpop.f32.mrf.mxu0
    %v723 = vadd.f32 0.0, %v722
    %v724 = vpop.f32.mrf.mxu0
    %725 = vmatprep.mubr.bf16.mxu0 0
    %726 = vmatmul.mubr.bf16.gmra.mxu0 %v620
    %v727 = vpop.f32.mrf.mxu0
    %v728 = vadd.f32 0.0, %v727
    %v729 = vpop.f32.mrf.mxu0
    %v730 = vpop.f32.mrf.mxu0
    %v731 = vadd.f32 0.0, %v730
    %v732 = vpop.f32.mrf.mxu0
    %733 = vdwg.mxu0
    %v734 = vlaneseq
    %v735 = vshrl.u32 %v734, 7
    %v736 = vsub.s32 0, %v735
    %v737 = vrot.slane %v513, %v736
    %v738 = vadd.f32 %v720, %v737
    %v739 = vadd.f32 %v723, %v737
    %v740 = vadd.f32 %v728, %v737
    %v741 = vadd.f32 %v731, %v737
    %v742 = vmul.f32 %v738, 1.442695
    %v743 = vpow.pop %v742
    %v744 = vmul.f32 %v739, 1.442695
    %v745 = vpow.pop %v744
    %v746 = vmul.f32 %v740, 1.442695
    %v747 = vpow.pop %v746
    %v748 = vmul.f32 %v741, 1.442695
    %v749 = vpow.pop %v748
    %v750 = vadd.f32 %v743, 1.0
    %v751 = vadd.f32 %v745, 1.0
    %v752 = vadd.f32 %v747, 1.0
    %v753 = vadd.f32 %v749, 1.0
    %v754 = vmul.f32 %v750, %v750
    %v755 = vmul.f32 %v751, %v751
    %v756 = vmul.f32 %v752, %v752
    %v757 = vmul.f32 %v753, %v753
    %v758 = vadd.f32 %v754, 1.0
    %v759 = vadd.f32 %v755, 1.0
    %v760 = vadd.f32 %v756, 1.0
    %v761 = vadd.f32 %v757, 1.0
    %v762 = vrcp.pop %v758
    %v763 = vrcp.pop %v759
    %v764 = vrcp.pop %v760
    %v765 = vrcp.pop %v761
    %v766 = vmul.f32 %v762, 2.0
    %v767 = vmul.f32 %v763, 2.0
    %v768 = vmul.f32 %v764, 2.0
    %v769 = vmul.f32 %v765, 2.0
    %v770 = vsub.f32 1.0, %v766
    %v771 = vsub.f32 1.0, %v767
    %v772 = vsub.f32 1.0, %v768
    %v773 = vsub.f32 1.0, %v769
    %v774 = vmul.f32 %v738, %v770
    %v775 = vmul.f32 %v739, %v771
    %v776 = vmul.f32 %v740, %v772
    %v777 = vmul.f32 %v741, %v773
    %v778 = vld [vmem:[#allocation7 + $0x3] sm:$0x1]
    %v779 = vld [vmem:[#allocation7 + $0x4] sm:$0x1]
    %v780 = vld [vmem:[#allocation7 + $0x5] sm:$0x1]
    %v781 = vrot.slane %v774, 4
    %v782 = vadd.f32 %v774, %v781
    %v783 = vrot.slane %v782, 2
    %v784 = vadd.f32 %v782, %v783
    %v785 = vrot.slane %v784, 1
    %v786 = vadd.f32 %v784, %v785
    %v787 = vrot.slane %v775, 4
    %v788 = vadd.f32 %v775, %v787
    %v789 = vrot.slane %v788, 2
    %v790 = vadd.f32 %v788, %v789
    %v791 = vrot.slane %v790, 1
    %v792 = vadd.f32 %v790, %v791
    %v793 = vrot.slane %v776, 4
    %v794 = vadd.f32 %v776, %v793
    %v795 = vrot.slane %v794, 2
    %v796 = vadd.f32 %v794, %v795
    %v797 = vrot.slane %v796, 1
    %v798 = vadd.f32 %v796, %v797
    %v799 = vrot.slane %v777, 4
    %v800 = vadd.f32 %v777, %v799
    %v801 = vrot.slane %v800, 2
    %v802 = vadd.f32 %v800, %v801
    %v803 = vrot.slane %v802, 1
    %v804 = vadd.f32 %v802, %v803
    %v805 = vmul.f32 %v786, %v538
    %v806 = vmul.f32 %v792, %v538
    %v807 = vmul.f32 %v798, %v538
    %v808 = vmul.f32 %v804, %v538
    %v809 = vmul.f32 %v774, %v774
    %v810 = vmul.f32 %v775, %v775
    %v811 = vmul.f32 %v776, %v776
    %v812 = vmul.f32 %v777, %v777
    %v813 = vrot.slane %v809, 4
    %v814 = vadd.f32 %v809, %v813
    %v815 = vrot.slane %v814, 2
    %v816 = vadd.f32 %v814, %v815
    %v817 = vrot.slane %v816, 1
    %v818 = vadd.f32 %v816, %v817
    %v819 = vrot.slane %v810, 4
    %v820 = vadd.f32 %v810, %v819
    %v821 = vrot.slane %v820, 2
    %v822 = vadd.f32 %v820, %v821
    %v823 = vrot.slane %v822, 1
    %v824 = vadd.f32 %v822, %v823
    %v825 = vrot.slane %v811, 4
    %v826 = vadd.f32 %v811, %v825
    %v827 = vrot.slane %v826, 2
    %v828 = vadd.f32 %v826, %v827
    %v829 = vrot.slane %v828, 1
    %v830 = vadd.f32 %v828, %v829
    %v831 = vrot.slane %v812, 4
    %v832 = vadd.f32 %v812, %v831
    %v833 = vrot.slane %v832, 2
    %v834 = vadd.f32 %v832, %v833
    %v835 = vrot.slane %v834, 1
    %v836 = vadd.f32 %v834, %v835
    %v837 = vmul.f32 %v818, %v538
    %v838 = vmul.f32 %v824, %v538
    %v839 = vmul.f32 %v830, %v538
    %v840 = vmul.f32 %v836, %v538
    %v841 = vmul.f32 %v805, %v805
    %v842 = vmul.f32 %v806, %v806
    %v843 = vmul.f32 %v807, %v807
    %v844 = vmul.f32 %v808, %v808
    %v845 = vsub.f32 %v837, %v841
    %v846 = vsub.f32 %v838, %v842
    %v847 = vsub.f32 %v839, %v843
    %v848 = vsub.f32 %v840, %v844
    %v849 = vmax.f32 %v845, 0.0
    %v850 = vmax.f32 %v846, 0.0
    %v851 = vmax.f32 %v847, 0.0
    %v852 = vmax.f32 %v848, 0.0
    %v853 = vsub.f32 %v774, %v805
    %v854 = vsub.f32 %v775, %v806
    %v855 = vsub.f32 %v776, %v807
    %v856 = vsub.f32 %v777, %v808
    %v857 = vadd.f32 %v849, 1e-05
    %v858 = vadd.f32 %v850, 1e-05
    %v859 = vadd.f32 %v851, 1e-05
    %v860 = vadd.f32 %v852, 1e-05
    %v861 = vrsqrt.pop %v857
    %v862 = vrsqrt.pop %v858
    %v863 = vrsqrt.pop %v859
    %v864 = vrsqrt.pop %v860
    %v865 = vmul.f32 %v853, %v861
    %v866 = vmul.f32 %v854, %v862
    %v867 = vmul.f32 %v855, %v863
    %v868 = vmul.f32 %v856, %v864
    %v869 = vlaneseq
    %v870 = vshrl.u32 %v869, 7
    %v871 = vsub.s32 0, %v870
    %v872 = vrot.slane %v778, %v871
    %v873 = vmul.f32 %v865, %v872
    %v874 = vmul.f32 %v866, %v872
    %v875 = vmul.f32 %v867, %v872
    %v876 = vmul.f32 %v868, %v872
    %v877 = vlaneseq
    %v878 = vshrl.u32 %v877, 7
    %v879 = vsub.s32 0, %v878
    %v880 = vrot.slane %v779, %v879
    %v881 = vadd.f32 %v873, %v880
    %v882 = vadd.f32 %v874, %v880
    %v883 = vadd.f32 %v875, %v880
    %v884 = vadd.f32 %v876, %v880
    %v885 = vpack.c.bf16 %v882, %v881
    %v886 = vpack.c.bf16 %v884, %v883
    %s887 = scalar_lea.vmem [#allocation9], 64
    %v888 = vld [vmem:[%s887] sm:$0xf]
    %v889 = vld [vmem:[%s887 + $0x4] sm:$0xf]
    %v890 = vld [vmem:[%s887 + $0x8] sm:$0xf]
    %v891 = vld [vmem:[%s887 + $0xc] sm:$0xf]
    %v892 = vld [vmem:[%s887 + $0x10] sm:$0xf]
    %v893 = vld [vmem:[%s887 + $0x14] sm:$0xf]
    %v894 = vld [vmem:[%s887 + $0x18] sm:$0xf]
    %v895 = vld [vmem:[%s887 + $0x1c] sm:$0xf]
    %v896 = vld [vmem:[%s887 + $0x20] sm:$0xf]
    %v897 = vld [vmem:[%s887 + $0x24] sm:$0xf]
    %v898 = vld [vmem:[%s887 + $0x28] sm:$0xf]
    %v899 = vld [vmem:[%s887 + $0x2c] sm:$0xf]
    %v900 = vld [vmem:[%s887 + $0x30] sm:$0xf]
    %v901 = vld [vmem:[%s887 + $0x34] sm:$0xf]
    %v902 = vld [vmem:[%s887 + $0x38] sm:$0xf]
    %v903 = vld [vmem:[%s887 + $0x3c] sm:$0xf]
    %v920 = vunpack.c.l.b16 %v888
    %v921 = vunpack.c.l.b16 %v889
    %v922 = vunpack.c.l.b16 %v890
    %v923 = vunpack.c.l.b16 %v891
    %v924 = vunpack.c.l.b16 %v892
    %v925 = vunpack.c.l.b16 %v893
    %v926 = vunpack.c.l.b16 %v894
    %v927 = vunpack.c.l.b16 %v895
    %v928 = vunpack.c.l.b16 %v896
    %v929 = vunpack.c.l.b16 %v897
    %v930 = vunpack.c.l.b16 %v898
    %v931 = vunpack.c.l.b16 %v899
    %v932 = vunpack.c.l.b16 %v900
    %v933 = vunpack.c.l.b16 %v901
    %v934 = vunpack.c.l.b16 %v902
    %v935 = vunpack.c.l.b16 %v903
    %v936 = vpack.c.b16 %v921, %v920
    %v937 = vpack.c.b16 %v923, %v922
    %v938 = vpack.c.b16 %v925, %v924
    %v939 = vpack.c.b16 %v927, %v926
    %v940 = vpack.c.b16 %v929, %v928
    %v941 = vpack.c.b16 %v931, %v930
    %v942 = vpack.c.b16 %v933, %v932
    %v943 = vpack.c.b16 %v935, %v934
    %952 = vmatprep.subr.bf16.mxu0 0
    %953 = vmatpush1.bf16.msra.mxu0 %v943
    %954 = vmatprep.subr.bf16.mxu0 0
    %955 = vmatpush1.bf16.msra.mxu0 %v942
    %956 = vmatprep.subr.bf16.mxu0 0
    %957 = vmatpush1.bf16.msra.mxu0 %v941
    %958 = vmatprep.subr.bf16.mxu0 0
    %959 = vmatpush1.bf16.msra.mxu0 %v940
    %960 = vmatprep.subr.bf16.mxu0 0
    %961 = vmatpush1.bf16.msra.mxu0 %v939
    %962 = vmatprep.subr.bf16.mxu0 0
    %963 = vmatpush1.bf16.msra.mxu0 %v938
    %964 = vmatprep.subr.bf16.mxu0 0
    %965 = vmatpush1.bf16.msra.mxu0 %v937
    %966 = vmatprep.subr.bf16.mxu0 0
    %967 = vmatpush1.bf16.msra.mxu0 %v936
    %968 = vmatprep.subr.bf16.mxu0 0
    %969 = vmatpush2.bf16.msra.mxu0 0
    %970 = vmatprep.subr.bf16.mxu0 0
    %971 = vmatpush2.bf16.msra.mxu0 0
    %972 = vmatprep.subr.bf16.mxu0 0
    %973 = vmatpush2.bf16.msra.mxu0 0
    %974 = vmatprep.subr.bf16.mxu0 0
    %975 = vmatpush2.bf16.msra.mxu0 0
    %976 = vmatprep.subr.bf16.mxu0 0
    %977 = vmatpush2.bf16.msra.mxu0 0
    %978 = vmatprep.subr.bf16.mxu0 0
    %979 = vmatpush2.bf16.msra.mxu0 0
    %980 = vmatprep.subr.bf16.mxu0 0
    %981 = vmatpush2.bf16.msra.mxu0 0
    %982 = vmatprep.subr.bf16.mxu0 0
    %983 = vmatpush2.bf16.msra.mxu0 0
    %984 = vmatprep.mubr.bf16.mxu0 0
    %985 = vmatmul.mubr.bf16.gmra.mxu0 %v885
    %v986 = vpop.f32.mrf.mxu0
    %v987 = vadd.f32 0.0, %v986
    %v988 = vpop.f32.mrf.mxu0
    %v989 = vpop.f32.mrf.mxu0
    %v990 = vadd.f32 0.0, %v989
    %v991 = vpop.f32.mrf.mxu0
    %992 = vmatprep.mubr.bf16.mxu0 0
    %993 = vmatmul.mubr.bf16.gmra.mxu0 %v886
    %v994 = vpop.f32.mrf.mxu0
    %v995 = vadd.f32 0.0, %v994
    %v996 = vpop.f32.mrf.mxu0
    %v997 = vpop.f32.mrf.mxu0
    %v998 = vadd.f32 0.0, %v997
    %v999 = vpop.f32.mrf.mxu0
    %1000 = vdwg.mxu0
    %v1001 = vlaneseq
    %v1002 = vshrl.u32 %v1001, 7
    %v1003 = vsub.s32 0, %v1002
    %v1004 = vrot.slane %v780, %v1003
    %v1005 = vadd.f32 %v987, %v1004
    %v1006 = vadd.f32 %v990, %v1004
    %v1007 = vadd.f32 %v995, %v1004
    %v1008 = vadd.f32 %v998, %v1004
    %1009 = vst [vmem:[#allocation10] sm:$0xff] %v1005
    %1010 = vst [vmem:[#allocation10 + $0x8] sm:$0xff] %v1006
    %1011 = vst [vmem:[#allocation10 + $0x10] sm:$0xff] %v1007
    %1012 = vst [vmem:[#allocation10 + $0x18] sm:$0xff] %v1008
    // Predicated region
    $region26: #{func_time_forward.1} parent=1 // pred_check
      _
    $region27: #{func_time_forward.1} parent=1 // pred_check_branch
      %1014 = sbr.rel (0) target = $region29
    $region28: #{func_time_forward.1} parent=1 // pred_region
      %s1016 = ssub.s32 512, 512
      %1017 = vsyncadd [#allocation6], %s1016
      %s1018 = sshll.u32 [#allocation10], 4
      %s1019 = int_to_ptr.vmem [resolvable:$true] %s1018
      %1024 = dma.vmem_to_hbm [thread:$0]  %s1019, 512, %s4, [#allocation6], 128, 128, 8
    $region29: #{func_time_forward.1} parent=1 // pred_fallthru
      _
    // Predicated region
    $region30: #{func_time_forward.1} parent=1 // pred_check
      _
    $region31: #{func_time_forward.1} parent=1 // pred_check_branch
      %1026 = sbr.rel (0) target = $region33
    $region32: #{func_time_forward.1} parent=1 // pred_region
      %1027 = dma.done [#allocation6], 512
    $region33: #{func_time_forward.1} parent=1 // pred_fallthru
      _
    %1028 = vsyncpa [#allocation5], 1
    %1029 = vsyncpa [#allocation8], 1
    %1030 = vsyncpa [#allocation6], 1

</llo_original>
